<compile_context>
chip_gen: v6e
topology: v6e:2x2x1
jax: 0.10.0
libtpu: 0.0.40
codegen_flags: <defaults>
</compile_context>

<pallas_src>
import functools
import math

import jax
import jax.numpy as jnp
from jax import lax
from jax.experimental import pallas as pl
from jax.experimental.pallas import tpu as pltpu


def _round_up(x, m):
    return (x + m - 1) // m * m


def _pick_m_tile(M):
    """Single M tile for small M (each weight streamed once); exact divisors
    (448 for ResNet's 12544/3136 row counts) for larger M so no padding."""
    Mp = _round_up(M, 16)
    if Mp <= 1024:
        return Mp, Mp
    for t in (512, 448, 384, 320, 256, 192, 128):
        if Mp % t == 0:
            return t, Mp
    return 256, _round_up(Mp, 256)


# ----------------------------------------------------------------------------
# Fused matmul + bias (BN folded into weights) + optional residual + ReLU
# ----------------------------------------------------------------------------
def _mm1_kernel(x_ref, w_ref, b_ref, *rest, relu, has_res):
    """Single K-step: no accumulator scratch, write the tile directly."""
    if has_res:
        r_ref, o_ref = rest
    else:
        (o_ref,) = rest
    y = jnp.dot(x_ref[...], w_ref[...], preferred_element_type=jnp.float32)
    y = y + b_ref[...]
    if has_res:
        y = y + r_ref[...].astype(jnp.float32)
    if relu:
        y = jnp.maximum(y, 0.0)
    o_ref[...] = y.astype(o_ref.dtype)


def _mmk_kernel(x_ref, w_ref, b_ref, *rest, relu, has_res):
    """Multi K-step fallback with an fp32 accumulator (unused for this net)."""
    if has_res:
        r_ref, o_ref, acc_ref = rest
    else:
        o_ref, acc_ref = rest
    k = pl.program_id(2)

    @pl.when(k == 0)
    def _():
        acc_ref[...] = jnp.zeros_like(acc_ref)

    acc_ref[...] += jnp.dot(x_ref[...], w_ref[...],
                            preferred_element_type=jnp.float32)

    @pl.when(k == pl.num_programs(2) - 1)
    def _():
        y = acc_ref[...] + b_ref[...]
        if has_res:
            y = y + r_ref[...].astype(jnp.float32)
        if relu:
            y = jnp.maximum(y, 0.0)
        o_ref[...] = y.astype(o_ref.dtype)


@functools.partial(jax.jit, static_argnames=("relu",))
def matmul_bias_act(x, w, bias, residual, *, relu):
    """out = act((x @ w) + bias [+ residual]); x:(M,K) bf16, w:(K,N) bf16."""
    x = x.astype(jnp.bfloat16)
    w = w.astype(jnp.bfloat16)
    M, K = x.shape
    _, N = w.shape

    tm, Mp = _pick_m_tile(M)
    Np = _round_up(N, 128)
    tn = 256 if Np % 256 == 0 else 128

    # K tiling: a single full-K reduction step whenever the operands fit VMEM
    # (covers every layer of this network, K <= 4608).  Ragged K (conv1's 147)
    # stays unpadded: a full-extent K block is exempt from the 128-lane rule
    # and avoids an extra pad pass over the 16 MB patch tensor.
    if K <= 4608:
        tk, Kp = K, K
    elif K % 128 == 0:
        tk = next(t for t in (512, 384, 256, 128) if K % t == 0)
        Kp = K
    else:
        tk, Kp = 128, _round_up(K, 128)

    n_i = Mp // tm
    # v7x has two TensorCores: keep the parallel grid product >= 2 if possible.
    if n_i * (Np // tn) < 2 and Np >= 256:
        tn = 128

    xp = x if (Mp == M and Kp == K) else jnp.pad(x, ((0, Mp - M), (0, Kp - K)))
    wp = w if (Kp == K and Np == N) else jnp.pad(w, ((0, Kp - K), (0, Np - N)))
    bp = bias.reshape(1, N).astype(jnp.float32)
    if Np != N:
        bp = jnp.pad(bp, ((0, 0), (0, Np - N)))

    has_res = residual is not None
    rp = None
    if has_res:
        rp = residual.astype(jnp.bfloat16)
        if Mp != M or Np != N:
            rp = jnp.pad(rp, ((0, Mp - M), (0, Np - N)))

    if Kp // tk == 1:
        in_specs = [pl.BlockSpec((tm, tk), lambda i, j: (i, 0)),
                    pl.BlockSpec((tk, tn), lambda i, j: (0, j)),
                    pl.BlockSpec((1, tn), lambda i, j: (0, j))]
        args = [xp, wp, bp]
        if has_res:
            in_specs.append(pl.BlockSpec((tm, tn), lambda i, j: (i, j)))
            args.append(rp)
        out = pl.pallas_call(
            functools.partial(_mm1_kernel, relu=relu, has_res=has_res),
            out_shape=jax.ShapeDtypeStruct((Mp, Np), jnp.bfloat16),
            grid_spec=pltpu.PrefetchScalarGridSpec(
                num_scalar_prefetch=0,
                grid=(Mp // tm, Np // tn),
                in_specs=in_specs,
                out_specs=pl.BlockSpec((tm, tn), lambda i, j: (i, j))),
            compiler_params=pltpu.CompilerParams(
                dimension_semantics=("parallel", "parallel"),
                vmem_limit_bytes=32 * 1024 * 1024),
        )(*args)
    else:
        in_specs = [pl.BlockSpec((tm, tk), lambda i, j, k: (i, k)),
                    pl.BlockSpec((tk, tn), lambda i, j, k: (k, j)),
                    pl.BlockSpec((1, tn), lambda i, j, k: (0, j))]
        args = [xp, wp, bp]
        if has_res:
            in_specs.append(pl.BlockSpec((tm, tn), lambda i, j, k: (i, j)))
            args.append(rp)
        out = pl.pallas_call(
            functools.partial(_mmk_kernel, relu=relu, has_res=has_res),
            out_shape=jax.ShapeDtypeStruct((Mp, Np), jnp.bfloat16),
            grid_spec=pltpu.PrefetchScalarGridSpec(
                num_scalar_prefetch=0,
                grid=(Mp // tm, Np // tn, Kp // tk),
                in_specs=in_specs,
                out_specs=pl.BlockSpec((tm, tn), lambda i, j, k: (i, j)),
                scratch_shapes=[pltpu.VMEM((tm, tn), jnp.float32)]),
            compiler_params=pltpu.CompilerParams(
                dimension_semantics=("parallel", "parallel", "arbitrary"),
                vmem_limit_bytes=32 * 1024 * 1024),
        )(*args)

    if Mp == M and Np == N:
        return out
    return out[:M, :N]


# ----------------------------------------------------------------------------
# Conv + folded BN + optional fused residual + ReLU
# ----------------------------------------------------------------------------
@functools.partial(jax.jit, static_argnames=("kh", "kw", "stride", "pad", "relu"))
def conv_bn(x, wm, bias, residual, *, kh, kw, stride, pad, relu):
    """x: NHWC bf16; wm: (kh*kw*Cin, Cout) bf16 with BN scale pre-folded."""
    x = x.astype(jnp.bfloat16)
    N, H, W, C = x.shape
    cout = wm.shape[1]
    if kh == 1 and kw == 1 and pad == 0:
        xs = x[:, ::stride, ::stride, :] if stride != 1 else x
        Ho, Wo = xs.shape[1], xs.shape[2]
        patches = xs.reshape(N * Ho * Wo, C)
    else:
        # TODO(synk): tap reduction is still an XLA-level im2col (bf16); moving
        # it inside the matmul kernel (per-image halo blocks) is the remaining
        # item from the perf review.
        xp = jnp.pad(x, ((0, 0), (pad, pad), (pad, pad), (0, 0)))
        Ho = (H + 2 * pad - kh) // stride + 1
        Wo = (W + 2 * pad - kw) // stride + 1
        cols = []
        for i in range(kh):
            for j in range(kw):
                cols.append(lax.slice(
                    xp, (0, i, j, 0),
                    (N, i + (Ho - 1) * stride + 1, j + (Wo - 1) * stride + 1, C),
                    (1, stride, stride, 1)))
        patches = jnp.stack(cols, axis=3).reshape(N * Ho * Wo, kh * kw * C)
    res2 = None if residual is None else residual.reshape(N * Ho * Wo, cout)
    y = matmul_bias_act(patches, wm, bias, res2, relu=relu)
    return y.reshape(N, Ho, Wo, cout)


# ----------------------------------------------------------------------------
# Pooling: taps reduced in-kernel from per-image blocks (no stacked-tap tensor)
# ----------------------------------------------------------------------------
def _maxpool3x3s2_kernel(x_ref, o_ref):
    # x_ref: (1, Hq, 2, Wq, 2*C) padded image with H/W parity folded in (bf16).
    # o_ref: (1, Ho, Wo, C).
    _, Ho, Wo, C = o_ref.shape
    res = None
    for i in range(3):
        hq, hp = i // 2, i % 2
        for j in range(3):
            wq, wp = j // 2, j % 2
            v = x_ref[0, hq:hq + Ho, hp, wq:wq + Wo, wp * C:(wp + 1) * C]
            res = v if res is None else jnp.maximum(res, v)
    o_ref[0] = res.astype(o_ref.dtype)


@jax.jit
def maxpool_3x3_s2_p1(x):
    """MaxPool2d(3, stride=2, padding=1).  Input is post-ReLU (>= 0) so zero
    padding is equivalent to PyTorch's -inf padding.  The stride-2 access
    becomes unit-stride slices by folding the H/W parity into extra dims
    (a free reshape); all 9 taps are reduced in-kernel."""
    N, H, W, C = x.shape
    Ho = (H + 2 - 3) // 2 + 1
    Wo = (W + 2 - 3) // 2 + 1
    Hp, Wp = H + 2, W + 2                                   # even
    xp = jnp.pad(x, ((0, 0), (1, 1), (1, 1), (0, 0)))
    xr = xp.reshape(N, Hp // 2, 2, Wp // 2, 2 * C)
    return pl.pallas_call(
        _maxpool3x3s2_kernel,
        out_shape=jax.ShapeDtypeStruct((N, Ho, Wo, C), x.dtype),
        grid=(N,),
        in_specs=[pl.BlockSpec((1, Hp // 2, 2, Wp // 2, 2 * C),
                               lambda n: (n, 0, 0, 0, 0))],
        out_specs=pl.BlockSpec((1, Ho, Wo, C), lambda n: (n, 0, 0, 0)),
        compiler_params=pltpu.CompilerParams(
            dimension_semantics=("parallel",),
            vmem_limit_bytes=32 * 1024 * 1024),
    )(xr)


def _avgpool3x3s1_kernel(x_ref, o_ref):
    # x_ref: (1, Ho+2, Wo+2, C) padded image; o_ref: (1, Ho, Wo, C).
    _, Ho, Wo, _ = o_ref.shape
    acc = None
    for i in range(3):
        for j in range(3):
            v = x_ref[0, i:i + Ho, j:j + Wo, :].astype(jnp.float32)
            acc = v if acc is None else acc + v
    # Divide by 9 including padding: matches PyTorch count_include_pad=True.
    o_ref[0] = (acc * (1.0 / 9.0)).astype(o_ref.dtype)


@jax.jit
def avgpool_3x3_s1_p1(x):
    """F.avg_pool2d(x, kernel_size=3, stride=1, padding=1), taps in-kernel."""
    N, H, W, C = x.shape
    xp = jnp.pad(x, ((0, 0), (1, 1), (1, 1), (0, 0)))
    return pl.pallas_call(
        _avgpool3x3s1_kernel,
        out_shape=jax.ShapeDtypeStruct((N, H, W, C), x.dtype),
        grid=(N,),
        in_specs=[pl.BlockSpec((1, H + 2, W + 2, C), lambda n: (n, 0, 0, 0))],
        out_specs=pl.BlockSpec((1, H, W, C), lambda n: (n, 0, 0, 0)),
        compiler_params=pltpu.CompilerParams(
            dimension_semantics=("parallel",),
            vmem_limit_bytes=32 * 1024 * 1024),
    )(xp)


def _gap_kernel(x_ref, o_ref, *, inv_count):
    s = jnp.sum(x_ref[...].astype(jnp.float32), axis=1) * inv_count
    o_ref[...] = s.astype(o_ref.dtype)


@jax.jit
def global_avg_pool(x):
    """AvgPool2d(H) over the full HxW map -> (N, C) fp32; one call, one block."""
    N, H, W, C = x.shape
    x2 = x.reshape(N, H * W, C)
    return pl.pallas_call(
        functools.partial(_gap_kernel, inv_count=1.0 / float(H * W)),
        out_shape=jax.ShapeDtypeStruct((N, C), jnp.float32),
        grid=(1,),
        in_specs=[pl.BlockSpec((N, H * W, C), lambda i: (0, 0, 0))],
        out_specs=pl.BlockSpec((N, C), lambda i: (0, 0)),
    )(x2)


# ----------------------------------------------------------------------------
# Deterministic parameter construction (synthetic; BN folded into weights)
# ----------------------------------------------------------------------------
def _conv_bn_param(key, cout, cin, kh, kw, eps, cin_pad=None, cout_pad=None):
    std = math.sqrt(2.0 / (kh * kw * cout))
    w = jax.random.normal(key, (cout, cin, kh, kw), jnp.float32) * std
    # eval-mode BN: gamma=1, beta=0, running_mean=0, running_var=1 -> fold.
    scale = 1.0 / math.sqrt(1.0 + eps)
    wm = jnp.transpose(w, (2, 3, 1, 0)).reshape(kh * kw * cin, cout) * scale
    if cin_pad is not None and cin_pad > cin:
        assert kh == 1 and kw == 1
        wm = jnp.pad(wm, ((0, cin_pad - cin), (0, 0)))      # zero input rows
    nco = cout
    if cout_pad is not None and cout_pad > cout:
        wm = jnp.pad(wm, ((0, 0), (0, cout_pad - cout)))     # zero out columns
        nco = cout_pad
    return {"w": wm.astype(jnp.bfloat16), "b": jnp.zeros((nco,), jnp.float32)}


RESNET_CFG = ((64, 3, 1), (128, 4, 2), (256, 6, 2), (512, 3, 2))


def build_resnet50_params(key):
    idx = [0]

    def nk():
        k = jax.random.fold_in(key, idx[0])
        idx[0] += 1
        return k

    eps = 1e-5
    # conv1's 64 output channels are zero-padded to 128 and carried through the
    # max pool and into layer1 block0 (zero weight rows): lane-dense pooling
    # and MXU-aligned K, numerically identical to the 64-channel path.
    params = {"conv1": _conv_bn_param(nk(), 64, 3, 7, 7, eps, cout_pad=128)}
    inplanes = 64
    layers = []
    for li, (planes, blocks, stride) in enumerate(RESNET_CFG):
        layer = []
        for b in range(blocks):
            s = stride if b == 0 else 1
            cin_pad = 128 if (li == 0 and b == 0) else None
            blk = {
                "conv1": _conv_bn_param(nk(), planes, inplanes, 1, 1, eps,
                                        cin_pad=cin_pad),
                "conv2": _conv_bn_param(nk(), planes, planes, 3, 3, eps),
                "conv3": _conv_bn_param(nk(), planes * 4, planes, 1, 1, eps),
            }
            if s != 1 or inplanes != planes * 4:
                blk["down"] = _conv_bn_param(nk(), planes * 4, inplanes, 1, 1,
                                             eps, cin_pad=cin_pad)
            layer.append(blk)
            inplanes = planes * 4
        layers.append(layer)
    params["layers"] = layers
    return params


def build_inception_params(key, in_channels=2048, pool_features=64,
                           num_classes=31):
    idx = [0]

    def nk():
        k = jax.random.fold_in(key, idx[0])
        idx[0] += 1
        return k

    eps = 1e-3
    b1 = _conv_bn_param(nk(), 64, in_channels, 1, 1, eps)
    b5_1 = _conv_bn_param(nk(), 48, in_channels, 1, 1, eps)
    b3_1 = _conv_bn_param(nk(), 64, in_channels, 1, 1, eps)
    return {
        # The three 1x1 branch stems read the same input: fuse into one matmul
        # (64 + 48 + 64 = 176 output columns) and split the result afterwards.
        "stem_w": jnp.concatenate([b1["w"], b5_1["w"], b3_1["w"]], axis=1),
        "stem_b": jnp.concatenate([b1["b"], b5_1["b"], b3_1["b"]], axis=0),
        "b5x5_2": _conv_bn_param(nk(), 64, 48, 5, 5, eps),
        "b3x3_2": _conv_bn_param(nk(), 96, 64, 3, 3, eps),
        "b3x3_3": _conv_bn_param(nk(), 96, 96, 3, 3, eps),
        "bpool": _conv_bn_param(nk(), pool_features, in_channels, 1, 1, eps),
        "fc_w": jax.random.normal(nk(), (288, num_classes), jnp.float32)
                * (1.0 / math.sqrt(288.0)),
        "fc_b": jnp.zeros((num_classes,), jnp.float32),
    }


# ----------------------------------------------------------------------------
# Model forward
# ----------------------------------------------------------------------------
def resnet50_forward(x, params):
    x = conv_bn(x, params["conv1"]["w"], params["conv1"]["b"], None,
                kh=7, kw=7, stride=2, pad=3, relu=True)       # (N,112,112,128)
    x = maxpool_3x3_s2_p1(x)                                  # (N, 56, 56,128)
    for li, (planes, blocks, stride0) in enumerate(RESNET_CFG):
        for bi in range(blocks):
            blk = params["layers"][li][bi]
            s = stride0 if bi == 0 else 1
            out = conv_bn(x, blk["conv1"]["w"], blk["conv1"]["b"], None,
                          kh=1, kw=1, stride=1, pad=0, relu=True)
            out = conv_bn(out, blk["conv2"]["w"], blk["conv2"]["b"], None,
                          kh=3, kw=3, stride=s, pad=1, relu=True)
            if "down" in blk:
                res = conv_bn(x, blk["down"]["w"], blk["down"]["b"], None,
                              kh=1, kw=1, stride=s, pad=0, relu=False)
            else:
                res = x
            # conv3 + BN + residual add + ReLU fused in one kernel epilogue.
            x = conv_bn(out, blk["conv3"]["w"], blk["conv3"]["b"], res,
                        kh=1, kw=1, stride=1, pad=0, relu=True)
    return x  # (N, 7, 7, 2048) bf16 for 224x224 input


def inception_c_head(x, p):
    # Fused 1x1 stems for branch1x1 / branch5x5_1 / branch3x3dbl_1.
    stem = conv_bn(x, p["stem_w"], p["stem_b"], None,
                   kh=1, kw=1, stride=1, pad=0, relu=True)    # (N,7,7,176)
    b1 = stem[..., 0:64]
    b5 = stem[..., 64:112]
    b3 = stem[..., 112:176]
    b5 = conv_bn(b5, p["b5x5_2"]["w"], p["b5x5_2"]["b"], None,
                 kh=5, kw=5, stride=1, pad=2, relu=True)
    b3 = conv_bn(b3, p["b3x3_2"]["w"], p["b3x3_2"]["b"], None,
                 kh=3, kw=3, stride=1, pad=1, relu=True)
    b3 = conv_bn(b3, p["b3x3_3"]["w"], p["b3x3_3"]["b"], None,
                 kh=3, kw=3, stride=1, pad=1, relu=True)
    bp = avgpool_3x3_s1_p1(x)
    bp = conv_bn(bp, p["bpool"]["w"], p["bpool"]["b"], None,
                 kh=1, kw=1, stride=1, pad=0, relu=True)
    # AvgPool2d(7, stride=1) on 7x7 maps == global average pool; one kernel
    # over the concatenated 288 channels instead of four per-branch calls.
    cat = jnp.concatenate([b1, b5, b3, bp], axis=-1)          # (N,7,7,288)
    return global_avg_pool(cat)                               # (N,288) fp32


def mynet_c_forward(source_nchw, target_nchw, s_label, resnet_p, inc_p):
    B = source_nchw.shape[0]
    # Run source and target through the shared backbone/head as one batch.
    x = jnp.concatenate([source_nchw, target_nchw], axis=0)
    x = jnp.transpose(x, (0, 2, 3, 1)).astype(jnp.bfloat16)   # NCHW -> NHWC

    feats = resnet50_forward(x, resnet_p)
    pooled = inception_c_head(feats, inc_p)                   # (2B, 288) fp32

    logits = pooled @ inc_p["fc_w"] + inc_p["fc_b"]           # tiny FC in jnp
    src_logits = logits[:B]
    _t_label = jnp.argmax(logits[B:], axis=1)                 # as in reference (unused)

    # TODO(synk): Coral.CORAL (training-mode loss) is not defined in the
    # reference source; eval-mode semantics used, so loss_coral stays zero.
    loss_coral = jnp.zeros((1,), jnp.float32)
    return src_logits, loss_coral


if __name__ == "__main__":
    key = jax.random.PRNGKey(0)
    k_src, k_tgt, k_res, k_inc = jax.random.split(key, 4)

    # Batch kept small (2 per domain); spatial must be 224 so layer4 output is
    # 7x7, as required by InceptionC's AvgPool2d(7) + Linear(288, num_classes).
    B = 2
    source = jax.random.normal(k_src, (B, 3, 224, 224), jnp.float32)
    target = jax.random.normal(k_tgt, (B, 3, 224, 224), jnp.float32)
    s_label = jnp.zeros((B,), jnp.int32)

    resnet_p = build_resnet50_params(k_res)
    inc_p = build_inception_params(k_inc, num_classes=31)

    logits, loss_coral = mynet_c_forward(source, target, s_label, resnet_p, inc_p)
    logits, loss_coral = jax.block_until_ready((logits, loss_coral))

    assert logits.shape == (B, 31), logits.shape
    assert loss_coral.shape == (1,), loss_coral.shape
    print("KERNEL_OK")
</pallas_src>

<mosaic_0001>
module attributes {stable_mosaic.version = 11 : i64} {
  func.func @_mm1_kernel(%arg0: i32, %arg1: i32, %arg2: memref<512x147xbf16, #tpu.memory_space<vmem>>, %arg3: memref<147x128xbf16, #tpu.memory_space<vmem>>, %arg4: memref<1x128xf32, #tpu.memory_space<vmem>>, %arg5: memref<512x128xbf16, #tpu.memory_space<vmem>>) attributes {dimension_semantics = [#tpu.dimension_semantics<parallel>, #tpu.dimension_semantics<parallel>], iteration_bounds = array<i64: 98, 1>, scalar_prefetch = 0 : i64, scratch_operands = 0 : i64, tpu.core_type = #tpu.core_type<tc>, window_params = [{transform_indices = @transform_0, window_bounds = array<i64: 512, 147>}, {transform_indices = @transform_1, window_bounds = array<i64: 147, 128>}, {transform_indices = @transform_2, window_bounds = array<i64: 1, 128>}, {transform_indices = @transform_3, window_bounds = array<i64: 512, 128>}]} {
    %c0 = arith.constant 0 : index
    %c0_0 = arith.constant 0 : index
    %0 = vector.load %arg2[%c0, %c0_0] : memref<512x147xbf16, #tpu.memory_space<vmem>>, vector<512x147xbf16>
    %c0_1 = arith.constant 0 : index
    %c0_2 = arith.constant 0 : index
    %1 = vector.load %arg3[%c0_1, %c0_2] : memref<147x128xbf16, #tpu.memory_space<vmem>>, vector<147x128xbf16>
    %cst = arith.constant dense<0.000000e+00> : vector<512x128xf32>
    %2 = tpu.matmul %0, %1, %cst {dimension_numbers = #tpu.dot_dimension_numbers<[1], [0], [0], [1], [0, 0, 1, 1], [], []>} : vector<512x147xbf16>, vector<147x128xbf16>, vector<512x128xf32> -> vector<512x128xf32>
    %c0_3 = arith.constant 0 : index
    %c0_4 = arith.constant 0 : index
    %3 = vector.load %arg4[%c0_3, %c0_4] : memref<1x128xf32, #tpu.memory_space<vmem>>, vector<1x128xf32>
    %4 = vector.broadcast %3 : vector<1x128xf32> to vector<512x128xf32>
    %5 = arith.addf %2, %4 : vector<512x128xf32>
    %cst_5 = arith.constant 0.000000e+00 : f32
    %6 = vector.broadcast %cst_5 : f32 to vector<512x128xf32>
    %7 = arith.maximumf %5, %6 : vector<512x128xf32>
    %8 = arith.truncf %7 : vector<512x128xf32> to vector<512x128xbf16>
    %c0_6 = arith.constant 0 : index
    %c0_7 = arith.constant 0 : index
    %9 = vector.load %arg5[%c0_6, %c0_7] : memref<512x128xbf16, #tpu.memory_space<vmem>>, vector<512x128xbf16>
    tpu.vector_store %arg5[%c0_6, %c0_7], %8 {strides = array<i32>} : memref<512x128xbf16, #tpu.memory_space<vmem>>, vector<512x128xbf16>,
    return
  }
  func.func @transform_0(%arg0: i32, %arg1: i32) -> (i32, i32) {
    %c0_i32 = arith.constant 0 : i32
    %c0_i32_0 = arith.constant 0 : i32
    return %arg0, %c0_i32 : i32, i32
  }
  func.func @transform_1(%arg0: i32, %arg1: i32) -> (i32, i32) {
    %c0_i32 = arith.constant 0 : i32
    %c0_i32_0 = arith.constant 0 : i32
    return %c0_i32, %arg1 : i32, i32
  }
  func.func @transform_2(%arg0: i32, %arg1: i32) -> (i32, i32) {
    %c0_i32 = arith.constant 0 : i32
    %c0_i32_0 = arith.constant 0 : i32
    return %c0_i32, %arg1 : i32, i32
  }
  func.func @transform_3(%arg0: i32, %arg1: i32) -> (i32, i32) {
    %c0_i32 = arith.constant 0 : i32
    return %arg0, %arg1 : i32, i32
  }
}

</mosaic_0001>

<llo_original>
// kernel: matmul_bias_act.1
$region0: #{matmul_bias_act.1}
  #allocation0 [shape = 'u32[]', space=smem, size = 0x4, offset = 0x4, fixed_abs, tag = 'smem constant byte address 0x4 - core index']
  #allocation1 [shape = 'u32[144,128]{1,0:T(1,128)}', space=vmem, size = 0x12000, scoped, tag = 'internal scratch']
  %s0 = inlined_call_operand.vmem [shape: bf16[50176,147], index: 0, kind: input, shape index: {}]
  %s1 = inlined_call_operand.vmem [shape: bf16[147,128], index: 1, kind: input, shape index: {}]
  %s2 = inlined_call_operand.vmem [shape: f32[1,128], index: 2, kind: input, shape index: {}]
  %s3 = inlined_call_operand.hbm [shape: bf16[50176,128], index: 3, kind: output, shape index: {}]
  %s4 = sld [smem:[#allocation0]]
  $region45: #{matmul_bias_act.1} parent=0
    _
  %s6 = ssub.s32 1, %s4
  %s7 = scalar_select 0, %s6, %s4
  $region1: #{matmul_bias_act.1} parent=0
    #allocation2 [shape = 'u8[262144]{0}', space=vmem, size = 0x40000, scoped, tag = 'output window, operand 0']
    #allocation3 [shape = 's32[2]{0}', space=sflag, size = 0x8, scoped, tag = 'scoped memory for matmul_bias_act.1']
    %8 = vsyncpa [#allocation3], 0
    %s9 = scalar_lea.sflag [#allocation3], 1
    %10 = vsyncpa %s9, 0
    loop: start=0, step=1, limit=100
    $region2: #{matmul_bias_act.1} parent=1 // loop_pre_header
      _
    $region3: #{matmul_bias_act.1} parent=1 // loop_header
      %s12 = sphi 0, %s16
      %p13 = scmp.ge.s32.totalorder %s12, 100
      %s19 = sphi 0, %s31
      %s20 = sphi 0, %s27
      %s21 = sphi 0, %s19
      %s22 = sphi 0, %s20
      %s23 = sphi 0, %s21
      %s24 = sphi 0, %s22
      %s34 = sphi 0, %s36
      %s37 = sphi 0, %s34
      %s38 = sphi 0, %s37
      %s54 = sphi 0, %s38
      %s60 = sphi 0, %s62
      %s63 = sphi 0, %s60
      %s64 = sphi 0, %s63
      %s80 = sphi 0, %s64
      %s86 = sphi 0, %s88
      %s89 = sphi 0, %s86
      %s90 = sphi 0, %s89
      %s106 = sphi 0, %s90
      %s114 = sphi 0, %s116
      %s117 = sphi 0, %s114
      %s118 = sphi 0, %s117
      %s134 = sphi 0, %s118
    $region4: #{matmul_bias_act.1} parent=1 // loop_header_branch
      %15 = sbr.rel (%p13) target = $region8
    $region5: #{matmul_bias_act.1} parent=1 // loop_body
      %s17 = ssub.s32 %s12, 1
      %s18 = ssub.s32 %s12, 2
      %s25 = sadd.s32 1, %s20
      %p26 = scmp.ge.s32.totalorder %s25, 1
      %s27 = scalar_select %p26, 0, %s25
      %s28 = sadd.s32 1, %s19
      %s29 = scalar_select %p26, %s28, %s19
      %p30 = scmp.ge.s32.totalorder %s29, 98
      %s31 = scalar_select %p30, 0, %s29
      %s32 = ssub.s32 %s19, %s31
      %p33 = scmp.eq.s32.totalorder %s32, 0
      %s35 = sadd.s32 %s34, 1
      %s36 = scalar_select %p33, %s34, %s35
      %p39 = pneg %p33
      %p40 = scmp.eq.s32.totalorder %s12, 97
      %p41 = por %p39, %p40
      %p42 = scmp.ne.s32.totalorder %s34, %s37
      %p43 = scmp.eq.s32.totalorder %s12, 0
      %p44 = por %p42, %p43
      %p45 = scmp.ne.s32.totalorder %s34, %s37
      %p46 = scmp.eq.s32.totalorder %s17, 97
      %p47 = por %p45, %p46
      %p48 = scmp.ne.s32.totalorder %s37, %s38
      %p49 = scmp.eq.s32.totalorder %s17, 0
      %p50 = por %p48, %p49
      %p51 = scmp.ne.s32.totalorder %s37, %s38
      %p52 = scmp.eq.s32.totalorder %s18, 97
      %p53 = por %p51, %p52
      %p55 = scmp.ne.s32.totalorder %s38, %s54
      %p56 = scmp.eq.s32.totalorder %s18, 0
      %p57 = por %p55, %p56
      %s58 = ssub.s32 %s20, %s27
      %p59 = scmp.eq.s32.totalorder %s58, 0
      %s61 = sadd.s32 %s60, 1
      %s62 = scalar_select %p59, %s60, %s61
      %p65 = pneg %p59
      %p66 = scmp.eq.s32.totalorder %s12, 97
      %p67 = por %p65, %p66
      %p68 = scmp.ne.s32.totalorder %s60, %s63
      %p69 = scmp.eq.s32.totalorder %s12, 0
      %p70 = por %p68, %p69
      %p71 = scmp.ne.s32.totalorder %s60, %s63
      %p72 = scmp.eq.s32.totalorder %s17, 97
      %p73 = por %p71, %p72
      %p74 = scmp.ne.s32.totalorder %s63, %s64
      %p75 = scmp.eq.s32.totalorder %s17, 0
      %p76 = por %p74, %p75
      %p77 = scmp.ne.s32.totalorder %s63, %s64
      %p78 = scmp.eq.s32.totalorder %s18, 97
      %p79 = por %p77, %p78
      %p81 = scmp.ne.s32.totalorder %s64, %s80
      %p82 = scmp.eq.s32.totalorder %s18, 0
      %p83 = por %p81, %p82
      %s84 = ssub.s32 %s20, %s27
      %p85 = scmp.eq.s32.totalorder %s84, 0
      %s87 = sadd.s32 %s86, 1
      %s88 = scalar_select %p85, %s86, %s87
      %p91 = pneg %p85
      %p92 = scmp.eq.s32.totalorder %s12, 97
      %p93 = por %p91, %p92
      %p94 = scmp.ne.s32.totalorder %s86, %s89
      %p95 = scmp.eq.s32.totalorder %s12, 0
      %p96 = por %p94, %p95
      %p97 = scmp.ne.s32.totalorder %s86, %s89
      %p98 = scmp.eq.s32.totalorder %s17, 97
      %p99 = por %p97, %p98
      %p100 = scmp.ne.s32.totalorder %s89, %s90
      %p101 = scmp.eq.s32.totalorder %s17, 0
      %p102 = por %p100, %p101
      %p103 = scmp.ne.s32.totalorder %s89, %s90
      %p104 = scmp.eq.s32.totalorder %s18, 97
      %p105 = por %p103, %p104
      %p107 = scmp.ne.s32.totalorder %s90, %s106
      %p108 = scmp.eq.s32.totalorder %s18, 0
      %p109 = por %p107, %p108
      %s110 = ssub.s32 %s19, %s31
      %s111 = ssub.s32 %s20, %s27
      %s112 = sor.u32 %s110, %s111
      %p113 = scmp.eq.s32.totalorder %s112, 0
      %s115 = sadd.s32 %s114, 1
      %s116 = scalar_select %p113, %s114, %s115
      %p119 = pneg %p113
      %p120 = scmp.eq.s32.totalorder %s12, 97
      %p121 = por %p119, %p120
      %p122 = scmp.ne.s32.totalorder %s114, %s117
      %p123 = scmp.eq.s32.totalorder %s12, 0
      %p124 = por %p122, %p123
      %p125 = scmp.ne.s32.totalorder %s114, %s117
      %p126 = scmp.eq.s32.totalorder %s17, 97
      %p127 = por %p125, %p126
      %p128 = scmp.ne.s32.totalorder %s117, %s118
      %p129 = scmp.eq.s32.totalorder %s17, 0
      %p130 = por %p128, %p129
      %p131 = scmp.ne.s32.totalorder %s117, %s118
      %p132 = scmp.eq.s32.totalorder %s18, 97
      %p133 = por %p131, %p132
      %p135 = scmp.ne.s32.totalorder %s118, %s134
      %p136 = scmp.eq.s32.totalorder %s18, 0
      %p137 = por %p135, %p136
      %p138 = scmp.le.s32.totalorder 1, %s12
      %p139 = scmp.lt.s32.totalorder %s12, 99
      %p140 = pnand %p138, %p139
      %p141 = pneg %p140
      // Predicated region
      $region9: #{matmul_bias_act.1} parent=5 // pred_check
        _
      $region10: #{matmul_bias_act.1} parent=5 // pred_check_branch
        %143 = sbr.rel (%p140) target = $region12
      $region11: #{matmul_bias_act.1} parent=5 // pred_region
        %s144 = ssub.s32 %s12, 1
        // Predicated region
        $region13: #{matmul_bias_act.1} parent=11 // pred_check
          %p145 = pneg %p76
        $region14: #{matmul_bias_act.1} parent=11 // pred_check_branch
          %147 = sbr.rel (%p145) target = $region16
        $region15: #{matmul_bias_act.1} parent=11 // pred_region
          %p148 = scmp.lt.s32.totalorder %s22, 0
          %s149 = scalar_select %p148, %s22, 0
          %s150 = smul.addr %s149, 4
          %s151 = scalar_lea.vmem %s1, %s150
        $region16: #{matmul_bias_act.1} parent=11 // pred_fallthru
          _
        // Predicated region
        $region17: #{matmul_bias_act.1} parent=11 // pred_check
          %p152 = pneg %p102
        $region18: #{matmul_bias_act.1} parent=11 // pred_check_branch
          %154 = sbr.rel (%p152) target = $region20
        $region19: #{matmul_bias_act.1} parent=11 // pred_region
          %p155 = scmp.lt.s32.totalorder %s22, 0
          %s156 = scalar_select %p155, %s22, 0
          %s157 = scalar_lea.vmem %s2, %s156
        $region20: #{matmul_bias_act.1} parent=11 // pred_fallthru
          _
      $region12: #{matmul_bias_act.1} parent=5 // pred_fallthru
        _
      %p158 = scmp.lt.s32.totalorder %s12, 98
      // Predicated region
      $region21: #{matmul_bias_act.1} parent=5 // pred_check
        %p159 = pneg %p158
      $region22: #{matmul_bias_act.1} parent=5 // pred_check_branch
        %161 = sbr.rel (%p159) target = $region24
      $region23: #{matmul_bias_act.1} parent=5 // pred_region
        // Predicated region
        $region25: #{matmul_bias_act.1} parent=23 // pred_check
          %p162 = pneg %p44
        $region26: #{matmul_bias_act.1} parent=23 // pred_check_branch
          %164 = sbr.rel (%p162) target = $region28
        $region27: #{matmul_bias_act.1} parent=23 // pred_region
          %s165 = smul.u32 64, %s19
          %p166 = scmp.lt.s32.totalorder %s165, 6271
          %s167 = scalar_select %p166, %s165, 6271
          %s168 = smul.addr %s167, 2
          %s169 = smul.addr %s168, 4
          %s170 = scalar_lea.vmem %s0, %s169
          %s171 = smul.u32 64, %s19
        $region28: #{matmul_bias_act.1} parent=23 // pred_fallthru
          _
      $region24: #{matmul_bias_act.1} parent=5 // pred_fallthru
        _
      %p172 = scmp.le.s32.totalorder 1, %s12
      %p173 = scmp.lt.s32.totalorder %s12, 99
      %p174 = pnand %p172, %p173
      %p175 = pneg %p174
      // Predicated region
      $region29: #{matmul_bias_act.1} parent=5 // pred_check
        _
      $region30: #{matmul_bias_act.1} parent=5 // pred_check_branch
        %177 = sbr.rel (%p174) target = $region32
      $region31: #{matmul_bias_act.1} parent=5 // pred_region
        %s178 = ssub.s32 %s12, 1
        %s179 = smul.u32 64, %s21
        %p180 = scmp.lt.s32.totalorder %s179, 6271
        %s181 = scalar_select %p180, %s179, 6271
        %s182 = smul.addr %s181, 2
        %s183 = smul.addr %s182, 4
        %s184 = scalar_lea.vmem %s0, %s183
        %p185 = pneg %p50
        %p186 = pneg %p47
        %p187 = scmp.lt.s32.totalorder %s22, 0
        %s188 = scalar_select %p187, %s22, 0
        %s189 = smul.addr %s188, 4
        %s190 = scalar_lea.vmem %s1, %s189
        %p191 = pneg %p76
        %p192 = pneg %p73
        %p193 = scmp.lt.s32.totalorder %s22, 0
        %s194 = scalar_select %p193, %s22, 0
        %s195 = scalar_lea.vmem %s2, %s194
        %p196 = pneg %p102
        %p197 = pneg %p99
        %p198 = pneg %p130
        %p199 = pneg %p127
        %s200 = sand.u32 %s117, 1
        %s201 = scalar_lea.sflag [#allocation3], %s200
        %s202 = sand.u32 %s117, 1
        %s203 = smul.addr %s202, 256
        %s204 = scalar_lea.vmem [#allocation2], %s203
        %s205 = smul.u32 64, %s21
        %p206 = scmp.lt.s32.totalorder %s205, 6271
        %s207 = scalar_select %p206, %s205, 6271
        %s208 = smul.addr %s207, 2
        %s209 = smul.addr %s208, 4
        %s210 = scalar_lea.vmem %s0, %s209
        %s211 = smul.u32 64, %s21
        %p212 = scmp.lt.s32.totalorder %s22, 0
        %s213 = scalar_select %p212, %s22, 0
        %s214 = smul.addr %s213, 4
        %s215 = scalar_lea.vmem %s1, %s214
        %p216 = scmp.lt.s32.totalorder %s22, 0
        %s217 = scalar_select %p216, %s22, 0
        %s218 = scalar_lea.vmem %s2, %s217
        %s219 = smul.u32 64, %s21
        %v221 = vld [vmem:[%s210] sm:$0xff]
        %v222 = vld [vmem:[%s210 + $0x8] sm:$0xff]
        %v223 = vld [vmem:[%s210 + $0x10] sm:$0xff]
        %v224 = vld [vmem:[%s210 + $0x18] sm:$0xff]
        %v225 = vld [vmem:[%s210 + $0x20] sm:$0xff]
        %v226 = vld [vmem:[%s210 + $0x28] sm:$0xff]
        %v227 = vld [vmem:[%s210 + $0x30] sm:$0xff]
        %v228 = vld [vmem:[%s210 + $0x38] sm:$0xff]
        %v229 = vld [vmem:[%s210 + $0x40] sm:$0xff]
        %v230 = vld [vmem:[%s210 + $0x48] sm:$0xff]
        %v231 = vld [vmem:[%s210 + $0x50] sm:$0xff]
        %v232 = vld [vmem:[%s210 + $0x58] sm:$0xff]
        %v233 = vld [vmem:[%s210 + $0x60] sm:$0xff]
        %v234 = vld [vmem:[%s210 + $0x68] sm:$0xff]
        %v235 = vld [vmem:[%s210 + $0x70] sm:$0xff]
        %v236 = vld [vmem:[%s210 + $0x78] sm:$0xff]
        %v237 = vld [vmem:[%s210 + $0x80] sm:$0xff]
        %v238 = vld [vmem:[%s210 + $0x88] sm:$0xff]
        %v239 = vld [vmem:[%s210 + $0x90] sm:$0xff]
        %v240 = vld [vmem:[%s210 + $0x98] sm:$0xff]
        %v241 = vld [vmem:[%s210 + $0xa0] sm:$0xff]
        %v242 = vld [vmem:[%s210 + $0xa8] sm:$0xff]
        %v243 = vld [vmem:[%s210 + $0xb0] sm:$0xff]
        %v244 = vld [vmem:[%s210 + $0xb8] sm:$0xff]
        %v245 = vld [vmem:[%s210 + $0xc0] sm:$0xff]
        %v246 = vld [vmem:[%s210 + $0xc8] sm:$0xff]
        %v247 = vld [vmem:[%s210 + $0xd0] sm:$0xff]
        %v248 = vld [vmem:[%s210 + $0xd8] sm:$0xff]
        %v249 = vld [vmem:[%s210 + $0xe0] sm:$0xff]
        %v250 = vld [vmem:[%s210 + $0xe8] sm:$0xff]
        %v251 = vld [vmem:[%s210 + $0xf0] sm:$0xff]
        %v252 = vld [vmem:[%s210 + $0xf8] sm:$0xff]
        %v253 = vld [vmem:[%s210 + $0x100] sm:$0xff]
        %v254 = vld [vmem:[%s210 + $0x108] sm:$0xff]
        %v255 = vld [vmem:[%s210 + $0x110] sm:$0xff]
        %v256 = vld [vmem:[%s210 + $0x118] sm:$0xff]
        %v257 = vld [vmem:[%s210 + $0x120] sm:$0xff]
        %v258 = vld [vmem:[%s210 + $0x128] sm:$0xff]
        %v259 = vld [vmem:[%s210 + $0x130] sm:$0xff]
        %v260 = vld [vmem:[%s210 + $0x138] sm:$0xff]
        %v261 = vld [vmem:[%s210 + $0x140] sm:$0xff]
        %v262 = vld [vmem:[%s210 + $0x148] sm:$0xff]
        %v263 = vld [vmem:[%s210 + $0x150] sm:$0xff]
        %v264 = vld [vmem:[%s210 + $0x158] sm:$0xff]
        %v265 = vld [vmem:[%s210 + $0x160] sm:$0xff]
        %v266 = vld [vmem:[%s210 + $0x168] sm:$0xff]
        %v267 = vld [vmem:[%s210 + $0x170] sm:$0xff]
        %v268 = vld [vmem:[%s210 + $0x178] sm:$0xff]
        %v269 = vld [vmem:[%s210 + $0x180] sm:$0xff]
        %v270 = vld [vmem:[%s210 + $0x188] sm:$0xff]
        %v271 = vld [vmem:[%s210 + $0x190] sm:$0xff]
        %v272 = vld [vmem:[%s210 + $0x198] sm:$0xff]
        %v273 = vld [vmem:[%s210 + $0x1a0] sm:$0xff]
        %v274 = vld [vmem:[%s210 + $0x1a8] sm:$0xff]
        %v275 = vld [vmem:[%s210 + $0x1b0] sm:$0xff]
        %v276 = vld [vmem:[%s210 + $0x1b8] sm:$0xff]
        %v277 = vld [vmem:[%s210 + $0x1c0] sm:$0xff]
        %v278 = vld [vmem:[%s210 + $0x1c8] sm:$0xff]
        %v279 = vld [vmem:[%s210 + $0x1d0] sm:$0xff]
        %v280 = vld [vmem:[%s210 + $0x1d8] sm:$0xff]
        %v281 = vld [vmem:[%s210 + $0x1e0] sm:$0xff]
        %v282 = vld [vmem:[%s210 + $0x1e8] sm:$0xff]
        %v283 = vld [vmem:[%s210 + $0x1f0] sm:$0xff]
        %v284 = vld [vmem:[%s210 + $0x1f8] sm:$0xff]
        %v285 = vld [vmem:[%s215] sm:$0xf]
        %v286 = vld [vmem:[%s215 + $0x4] sm:$0xf]
        %v287 = vld [vmem:[%s215 + $0x8] sm:$0xf]
        %v288 = vld [vmem:[%s215 + $0xc] sm:$0xf]
        %v289 = vld [vmem:[%s215 + $0x10] sm:$0xf]
        %v290 = vld [vmem:[%s215 + $0x14] sm:$0xf]
        %v291 = vld [vmem:[%s215 + $0x18] sm:$0xf]
        %v292 = vld [vmem:[%s215 + $0x1c] sm:$0xf]
        %v293 = vld [vmem:[%s215 + $0x20] sm:$0xf]
        %v294 = vld [vmem:[%s215 + $0x24] sm:$0xf]
        %v295 = vld [vmem:[%s215 + $0x28] sm:$0xf]
        %v296 = vld [vmem:[%s215 + $0x2c] sm:$0xf]
        %v297 = vld [vmem:[%s215 + $0x30] sm:$0xf]
        %v298 = vld [vmem:[%s215 + $0x34] sm:$0xf]
        %v299 = vld [vmem:[%s215 + $0x38] sm:$0xf]
        %v300 = vld [vmem:[%s215 + $0x3c] sm:$0xf]
        %v301 = vld [vmem:[%s215 + $0x40] sm:$0xf]
        %v302 = vld [vmem:[%s215 + $0x44] sm:$0xf]
        %v303 = vld [vmem:[%s215 + $0x48] sm:$0x3]
        %v304 = vld [vmem:[%s218] sm:$0x1]
        %v306 = vlaneseq
        %v307 = vshrl.u32 %v306, 7
        %v308 = vsub.s32 0, %v307
        %v309 = vrot.slane %v304, %v308
        %v375 = vunpack.c.l.b16 %v221
        %v376 = vunpack.c.h.b16 %v221
        %v377 = vunpack.c.l.b16 %v222
        %v378 = vunpack.c.h.b16 %v222
        %v379 = vunpack.c.l.b16 %v223
        %v380 = vunpack.c.h.b16 %v223
        %v381 = vunpack.c.l.b16 %v224
        %v382 = vunpack.c.h.b16 %v224
        %v383 = vunpack.c.l.b16 %v225
        %v384 = vunpack.c.h.b16 %v225
        %v385 = vunpack.c.l.b16 %v226
        %v386 = vunpack.c.h.b16 %v226
        %v387 = vunpack.c.l.b16 %v227
        %v388 = vunpack.c.h.b16 %v227
        %v389 = vunpack.c.l.b16 %v228
        %v390 = vunpack.c.h.b16 %v228
        %v391 = vunpack.c.l.b16 %v229
        %v392 = vunpack.c.h.b16 %v229
        %v393 = vunpack.c.l.b16 %v230
        %v394 = vunpack.c.h.b16 %v230
        %v395 = vunpack.c.l.b16 %v231
        %v396 = vunpack.c.h.b16 %v231
        %v397 = vunpack.c.l.b16 %v232
        %v398 = vunpack.c.h.b16 %v232
        %v399 = vunpack.c.l.b16 %v233
        %v400 = vunpack.c.h.b16 %v233
        %v401 = vunpack.c.l.b16 %v234
        %v402 = vunpack.c.h.b16 %v234
        %v403 = vunpack.c.l.b16 %v235
        %v404 = vunpack.c.h.b16 %v235
        %v405 = vunpack.c.l.b16 %v236
        %v406 = vunpack.c.h.b16 %v236
        %v407 = vunpack.c.l.b16 %v237
        %v408 = vunpack.c.h.b16 %v237
        %v409 = vunpack.c.l.b16 %v238
        %v410 = vunpack.c.h.b16 %v238
        %v411 = vunpack.c.l.b16 %v239
        %v412 = vunpack.c.h.b16 %v239
        %v413 = vunpack.c.l.b16 %v240
        %v414 = vunpack.c.h.b16 %v240
        %v415 = vunpack.c.l.b16 %v241
        %v416 = vunpack.c.h.b16 %v241
        %v417 = vunpack.c.l.b16 %v242
        %v418 = vunpack.c.h.b16 %v242
        %v419 = vunpack.c.l.b16 %v243
        %v420 = vunpack.c.h.b16 %v243
        %v421 = vunpack.c.l.b16 %v244
        %v422 = vunpack.c.h.b16 %v244
        %v423 = vunpack.c.l.b16 %v245
        %v424 = vunpack.c.h.b16 %v245
        %v425 = vunpack.c.l.b16 %v246
        %v426 = vunpack.c.h.b16 %v246
        %v427 = vunpack.c.l.b16 %v247
        %v428 = vunpack.c.h.b16 %v247
        %v429 = vunpack.c.l.b16 %v248
        %v430 = vunpack.c.h.b16 %v248
        %v431 = vunpack.c.l.b16 %v249
        %v432 = vunpack.c.h.b16 %v249
        %v433 = vunpack.c.l.b16 %v250
        %v434 = vunpack.c.h.b16 %v250
        %v435 = vunpack.c.l.b16 %v251
        %v436 = vunpack.c.h.b16 %v251
        %v437 = vunpack.c.l.b16 %v252
        %v438 = vunpack.c.h.b16 %v252
        %v439 = vunpack.c.l.b16 %v253
        %v440 = vunpack.c.h.b16 %v253
        %v441 = vunpack.c.l.b16 %v254
        %v442 = vunpack.c.h.b16 %v254
        %v443 = vunpack.c.l.b16 %v255
        %v444 = vunpack.c.h.b16 %v255
        %v445 = vunpack.c.l.b16 %v256
        %v446 = vunpack.c.h.b16 %v256
        %v447 = vunpack.c.l.b16 %v257
        %v448 = vunpack.c.h.b16 %v257
        %v449 = vunpack.c.l.b16 %v258
        %v450 = vunpack.c.h.b16 %v258
        %v451 = vunpack.c.l.b16 %v259
        %v452 = vunpack.c.h.b16 %v259
        %v453 = vunpack.c.l.b16 %v260
        %v454 = vunpack.c.h.b16 %v260
        %v455 = vunpack.c.l.b16 %v261
        %v456 = vunpack.c.h.b16 %v261
        %v457 = vunpack.c.l.b16 %v262
        %v458 = vunpack.c.h.b16 %v262
        %v459 = vunpack.c.l.b16 %v263
        %v460 = vunpack.c.h.b16 %v263
        %v461 = vunpack.c.l.b16 %v264
        %v462 = vunpack.c.h.b16 %v264
        %v463 = vunpack.c.l.b16 %v265
        %v464 = vunpack.c.h.b16 %v265
        %v465 = vunpack.c.l.b16 %v266
        %v466 = vunpack.c.h.b16 %v266
        %v467 = vunpack.c.l.b16 %v267
        %v468 = vunpack.c.h.b16 %v267
        %v469 = vunpack.c.l.b16 %v268
        %v470 = vunpack.c.h.b16 %v268
        %v471 = vunpack.c.l.b16 %v269
        %v472 = vunpack.c.h.b16 %v269
        %v473 = vunpack.c.l.b16 %v270
        %v474 = vunpack.c.h.b16 %v270
        %v475 = vunpack.c.l.b16 %v271
        %v476 = vunpack.c.h.b16 %v271
        %v477 = vunpack.c.l.b16 %v272
        %v478 = vunpack.c.h.b16 %v272
        %v479 = vunpack.c.l.b16 %v273
        %v480 = vunpack.c.h.b16 %v273
        %v481 = vunpack.c.l.b16 %v274
        %v482 = vunpack.c.h.b16 %v274
        %v483 = vunpack.c.l.b16 %v275
        %v484 = vunpack.c.h.b16 %v275
        %v485 = vunpack.c.l.b16 %v276
        %v486 = vunpack.c.h.b16 %v276
        %v487 = vunpack.c.l.b16 %v277
        %v488 = vunpack.c.h.b16 %v277
        %v489 = vunpack.c.l.b16 %v278
        %v490 = vunpack.c.h.b16 %v278
        %v491 = vunpack.c.l.b16 %v279
        %v492 = vunpack.c.h.b16 %v279
        %v493 = vunpack.c.l.b16 %v280
        %v494 = vunpack.c.h.b16 %v280
        %v495 = vunpack.c.l.b16 %v281
        %v496 = vunpack.c.h.b16 %v281
        %v497 = vunpack.c.l.b16 %v282
        %v498 = vunpack.c.h.b16 %v282
        %v499 = vunpack.c.l.b16 %v283
        %v500 = vunpack.c.h.b16 %v283
        %v501 = vunpack.c.l.b16 %v284
        %v502 = vunpack.c.h.b16 %v284
        %v503 = vpack.c.b16 %v377, %v375
        %v504 = vpack.c.b16 %v378, %v376
        %v505 = vpack.c.b16 %v381, %v379
        %v506 = vpack.c.b16 %v382, %v380
        %v507 = vpack.c.b16 %v385, %v383
        %v508 = vpack.c.b16 %v386, %v384
        %v509 = vpack.c.b16 %v389, %v387
        %v510 = vpack.c.b16 %v390, %v388
        %v511 = vpack.c.b16 %v393, %v391
        %v512 = vpack.c.b16 %v394, %v392
        %v513 = vpack.c.b16 %v397, %v395
        %v514 = vpack.c.b16 %v398, %v396
        %v515 = vpack.c.b16 %v401, %v399
        %v516 = vpack.c.b16 %v402, %v400
        %v517 = vpack.c.b16 %v405, %v403
        %v518 = vpack.c.b16 %v406, %v404
        %v519 = vpack.c.b16 %v409, %v407
        %v520 = vpack.c.b16 %v410, %v408
        %v521 = vpack.c.b16 %v413, %v411
        %v522 = vpack.c.b16 %v414, %v412
        %v523 = vpack.c.b16 %v417, %v415
        %v524 = vpack.c.b16 %v418, %v416
        %v525 = vpack.c.b16 %v421, %v419
        %v526 = vpack.c.b16 %v422, %v420
        %v527 = vpack.c.b16 %v425, %v423
        %v528 = vpack.c.b16 %v426, %v424
        %v529 = vpack.c.b16 %v429, %v427
        %v530 = vpack.c.b16 %v430, %v428
        %v531 = vpack.c.b16 %v433, %v431
        %v532 = vpack.c.b16 %v434, %v432
        %v533 = vpack.c.b16 %v437, %v435
        %v534 = vpack.c.b16 %v438, %v436
        %v535 = vpack.c.b16 %v441, %v439
        %v536 = vpack.c.b16 %v442, %v440
        %v537 = vpack.c.b16 %v445, %v443
        %v538 = vpack.c.b16 %v446, %v444
        %v539 = vpack.c.b16 %v449, %v447
        %v540 = vpack.c.b16 %v450, %v448
        %v541 = vpack.c.b16 %v453, %v451
        %v542 = vpack.c.b16 %v454, %v452
        %v543 = vpack.c.b16 %v457, %v455
        %v544 = vpack.c.b16 %v458, %v456
        %v545 = vpack.c.b16 %v461, %v459
        %v546 = vpack.c.b16 %v462, %v460
        %v547 = vpack.c.b16 %v465, %v463
        %v548 = vpack.c.b16 %v466, %v464
        %v549 = vpack.c.b16 %v469, %v467
        %v550 = vpack.c.b16 %v470, %v468
        %v551 = vpack.c.b16 %v473, %v471
        %v552 = vpack.c.b16 %v474, %v472
        %v553 = vpack.c.b16 %v477, %v475
        %v554 = vpack.c.b16 %v478, %v476
        %v555 = vpack.c.b16 %v481, %v479
        %v556 = vpack.c.b16 %v482, %v480
        %v557 = vpack.c.b16 %v485, %v483
        %v558 = vpack.c.b16 %v486, %v484
        %v559 = vpack.c.b16 %v489, %v487
        %v560 = vpack.c.b16 %v490, %v488
        %v561 = vpack.c.b16 %v493, %v491
        %v562 = vpack.c.b16 %v494, %v492
        %v563 = vpack.c.b16 %v497, %v495
        %v564 = vpack.c.b16 %v498, %v496
        %v565 = vpack.c.b16 %v501, %v499
        %v566 = vpack.c.b16 %v502, %v500
        %v618 = vunpack.c.l.b16 %v285
        %v619 = vunpack.c.l.b16 %v286
        %v620 = vunpack.c.l.b16 %v287
        %v621 = vunpack.c.l.b16 %v288
        %v622 = vunpack.c.l.b16 %v289
        %v623 = vunpack.c.l.b16 %v290
        %v624 = vunpack.c.l.b16 %v291
        %v625 = vunpack.c.l.b16 %v292
        %v626 = vunpack.c.l.b16 %v293
        %v627 = vunpack.c.l.b16 %v294
        %v628 = vunpack.c.l.b16 %v295
        %v629 = vunpack.c.l.b16 %v296
        %v630 = vunpack.c.l.b16 %v297
        %v631 = vunpack.c.l.b16 %v298
        %v632 = vunpack.c.l.b16 %v299
        %v633 = vunpack.c.l.b16 %v300
        %v634 = vunpack.c.l.b16 %v301
        %v635 = vunpack.c.l.b16 %v302
        %v636 = vunpack.c.l.b16 %v303
        %v637 = vpack.c.b16 %v619, %v618
        %v638 = vpack.c.b16 %v621, %v620
        %v639 = vpack.c.b16 %v623, %v622
        %v640 = vpack.c.b16 %v625, %v624
        %v641 = vpack.c.b16 %v627, %v626
        %v642 = vpack.c.b16 %v629, %v628
        %v643 = vpack.c.b16 %v631, %v630
        %v644 = vpack.c.b16 %v633, %v632
        %v645 = vpack.c.b16 %v635, %v634
        %v646 = vpack.c.b16 %v636, %v636
        %vm656 = vcmask 154624
        %v658 = vsel %vm656, %v504, 0
        %v661 = vsel %vm656, %v506, 0
        %v664 = vsel %vm656, %v508, 0
        %v667 = vsel %vm656, %v510, 0
        %v670 = vsel %vm656, %v512, 0
        %v673 = vsel %vm656, %v514, 0
        %v676 = vsel %vm656, %v516, 0
        %v679 = vsel %vm656, %v518, 0
        %v682 = vsel %vm656, %v520, 0
        %v685 = vsel %vm656, %v522, 0
        %v688 = vsel %vm656, %v524, 0
        %v691 = vsel %vm656, %v526, 0
        %v694 = vsel %vm656, %v528, 0
        %v697 = vsel %vm656, %v530, 0
        %v700 = vsel %vm656, %v532, 0
        %v703 = vsel %vm656, %v534, 0
        %v706 = vsel %vm656, %v536, 0
        %v709 = vsel %vm656, %v538, 0
        %v712 = vsel %vm656, %v540, 0
        %v715 = vsel %vm656, %v542, 0
        %v718 = vsel %vm656, %v544, 0
        %v721 = vsel %vm656, %v546, 0
        %v724 = vsel %vm656, %v548, 0
        %v727 = vsel %vm656, %v550, 0
        %v730 = vsel %vm656, %v552, 0
        %v733 = vsel %vm656, %v554, 0
        %v736 = vsel %vm656, %v556, 0
        %v739 = vsel %vm656, %v558, 0
        %v742 = vsel %vm656, %v560, 0
        %v745 = vsel %vm656, %v562, 0
        %v748 = vsel %vm656, %v564, 0
        %v751 = vsel %vm656, %v566, 0
        %vm753 = vcmask 1040384
        %vm754 = vcmask 1041408
        %v755 = vsel %vm753, 4294967295, 65535
        %v756 = vsel %vm754, %v755, 0
        %v758 = vand.u32 %v646, %v756
        %760 = vmatprep.subr.bf16.mxu0 0
        %761 = vmatpush1.bf16.msra.mxu0 %v644
        %762 = vmatprep.subr.bf16.mxu0 0
        %763 = vmatpush1.bf16.msra.mxu0 %v643
        %764 = vmatprep.subr.bf16.mxu0 0
        %765 = vmatpush1.bf16.msra.mxu0 %v642
        %766 = vmatprep.subr.bf16.mxu0 0
        %767 = vmatpush1.bf16.msra.mxu0 %v641
        %768 = vmatprep.subr.bf16.mxu0 0
        %769 = vmatpush1.bf16.msra.mxu0 %v640
        %770 = vmatprep.subr.bf16.mxu0 0
        %771 = vmatpush1.bf16.msra.mxu0 %v639
        %772 = vmatprep.subr.bf16.mxu0 0
        %773 = vmatpush1.bf16.msra.mxu0 %v638
        %774 = vmatprep.subr.bf16.mxu0 0
        %775 = vmatpush1.bf16.msra.mxu0 %v637
        %776 = vmatprep.subr.bf16.mxu0 0
        %777 = vmatpush2.bf16.msra.mxu0 0
        %778 = vmatprep.subr.bf16.mxu0 0
        %779 = vmatpush2.bf16.msra.mxu0 0
        %780 = vmatprep.subr.bf16.mxu0 0
        %781 = vmatpush2.bf16.msra.mxu0 0
        %782 = vmatprep.subr.bf16.mxu0 0
        %783 = vmatpush2.bf16.msra.mxu0 0
        %784 = vmatprep.subr.bf16.mxu0 0
        %785 = vmatpush2.bf16.msra.mxu0 0
        %786 = vmatprep.subr.bf16.mxu0 0
        %787 = vmatpush2.bf16.msra.mxu0 0
        %788 = vmatprep.subr.bf16.mxu0 0
        %789 = vmatpush2.bf16.msra.mxu0 %v758
        %790 = vmatprep.subr.bf16.mxu0 0
        %791 = vmatpush2.bf16.msra.mxu0 %v645
        %792 = vmatprep.mubr.bf16.mxu0 %v658
        %793 = vmatmul.mubr.bf16.gmra.mxu0 %v503
        %v794 = vpop.f32.mrf.mxu0
        %v795 = vadd.f32 %v309, %v794
        %v796 = vpop.f32.mrf.mxu0
        %v797 = vpop.f32.mrf.mxu0
        %v798 = vadd.f32 %v309, %v797
        %v799 = vpop.f32.mrf.mxu0
        %800 = vmatprep.mubr.bf16.mxu0 %v661
        %801 = vmatmul.mubr.bf16.gmra.mxu0 %v505
        %v802 = vpop.f32.mrf.mxu0
        %v803 = vadd.f32 %v309, %v802
        %v804 = vpop.f32.mrf.mxu0
        %v805 = vpop.f32.mrf.mxu0
        %v806 = vadd.f32 %v309, %v805
        %v807 = vpop.f32.mrf.mxu0
        %808 = vmatprep.mubr.bf16.mxu0 %v664
        %809 = vmatmul.mubr.bf16.gmra.mxu0 %v507
        %v810 = vpop.f32.mrf.mxu0
        %v811 = vadd.f32 %v309, %v810
        %v812 = vpop.f32.mrf.mxu0
        %v813 = vpop.f32.mrf.mxu0
        %v814 = vadd.f32 %v309, %v813
        %v815 = vpop.f32.mrf.mxu0
        %816 = vmatprep.mubr.bf16.mxu0 %v667
        %817 = vmatmul.mubr.bf16.gmra.mxu0 %v509
        %v818 = vpop.f32.mrf.mxu0
        %v819 = vadd.f32 %v309, %v818
        %v820 = vpop.f32.mrf.mxu0
        %v821 = vpop.f32.mrf.mxu0
        %v822 = vadd.f32 %v309, %v821
        %v823 = vpop.f32.mrf.mxu0
        %824 = vmatprep.mubr.bf16.mxu0 %v670
        %825 = vmatmul.mubr.bf16.gmra.mxu0 %v511
        %v826 = vpop.f32.mrf.mxu0
        %v827 = vadd.f32 %v309, %v826
        %v828 = vpop.f32.mrf.mxu0
        %v829 = vpop.f32.mrf.mxu0
        %v830 = vadd.f32 %v309, %v829
        %v831 = vpop.f32.mrf.mxu0
        %832 = vmatprep.mubr.bf16.mxu0 %v673
        %833 = vmatmul.mubr.bf16.gmra.mxu0 %v513
        %v834 = vpop.f32.mrf.mxu0
        %v835 = vadd.f32 %v309, %v834
        %v836 = vpop.f32.mrf.mxu0
        %v837 = vpop.f32.mrf.mxu0
        %v838 = vadd.f32 %v309, %v837
        %v839 = vpop.f32.mrf.mxu0
        %840 = vmatprep.mubr.bf16.mxu0 %v676
        %841 = vmatmul.mubr.bf16.gmra.mxu0 %v515
        %v842 = vpop.f32.mrf.mxu0
        %v843 = vadd.f32 %v309, %v842
        %v844 = vpop.f32.mrf.mxu0
        %v845 = vpop.f32.mrf.mxu0
        %v846 = vadd.f32 %v309, %v845
        %v847 = vpop.f32.mrf.mxu0
        %848 = vmatprep.mubr.bf16.mxu0 %v679
        %849 = vmatmul.mubr.bf16.gmra.mxu0 %v517
        %v850 = vpop.f32.mrf.mxu0
        %v851 = vadd.f32 %v309, %v850
        %v852 = vpop.f32.mrf.mxu0
        %v853 = vpop.f32.mrf.mxu0
        %v854 = vadd.f32 %v309, %v853
        %v855 = vpop.f32.mrf.mxu0
        %856 = vmatprep.mubr.bf16.mxu0 %v682
        %857 = vmatmul.mubr.bf16.gmra.mxu0 %v519
        %v858 = vpop.f32.mrf.mxu0
        %v859 = vadd.f32 %v309, %v858
        %v860 = vpop.f32.mrf.mxu0
        %v861 = vpop.f32.mrf.mxu0
        %v862 = vadd.f32 %v309, %v861
        %v863 = vpop.f32.mrf.mxu0
        %864 = vmatprep.mubr.bf16.mxu0 %v685
        %865 = vmatmul.mubr.bf16.gmra.mxu0 %v521
        %v866 = vpop.f32.mrf.mxu0
        %v867 = vadd.f32 %v309, %v866
        %v868 = vpop.f32.mrf.mxu0
        %v869 = vpop.f32.mrf.mxu0
        %v870 = vadd.f32 %v309, %v869
        %v871 = vpop.f32.mrf.mxu0
        %872 = vmatprep.mubr.bf16.mxu0 %v688
        %873 = vmatmul.mubr.bf16.gmra.mxu0 %v523
        %v874 = vpop.f32.mrf.mxu0
        %v875 = vadd.f32 %v309, %v874
        %v876 = vpop.f32.mrf.mxu0
        %v877 = vpop.f32.mrf.mxu0
        %v878 = vadd.f32 %v309, %v877
        %v879 = vpop.f32.mrf.mxu0
        %880 = vmatprep.mubr.bf16.mxu0 %v691
        %881 = vmatmul.mubr.bf16.gmra.mxu0 %v525
        %v882 = vpop.f32.mrf.mxu0
        %v883 = vadd.f32 %v309, %v882
        %v884 = vpop.f32.mrf.mxu0
        %v885 = vpop.f32.mrf.mxu0
        %v886 = vadd.f32 %v309, %v885
        %v887 = vpop.f32.mrf.mxu0
        %888 = vmatprep.mubr.bf16.mxu0 %v694
        %889 = vmatmul.mubr.bf16.gmra.mxu0 %v527
        %v890 = vpop.f32.mrf.mxu0
        %v891 = vadd.f32 %v309, %v890
        %v892 = vpop.f32.mrf.mxu0
        %v893 = vpop.f32.mrf.mxu0
        %v894 = vadd.f32 %v309, %v893
        %v895 = vpop.f32.mrf.mxu0
        %896 = vmatprep.mubr.bf16.mxu0 %v697
        %897 = vmatmul.mubr.bf16.gmra.mxu0 %v529
        %v898 = vpop.f32.mrf.mxu0
        %v899 = vadd.f32 %v309, %v898
        %v900 = vpop.f32.mrf.mxu0
        %v901 = vpop.f32.mrf.mxu0
        %v902 = vadd.f32 %v309, %v901
        %v903 = vpop.f32.mrf.mxu0
        %904 = vmatprep.mubr.bf16.mxu0 %v700
        %905 = vmatmul.mubr.bf16.gmra.mxu0 %v531
        %v906 = vpop.f32.mrf.mxu0
        %v907 = vadd.f32 %v309, %v906
        %v908 = vpop.f32.mrf.mxu0
        %v909 = vpop.f32.mrf.mxu0
        %v910 = vadd.f32 %v309, %v909
        %v911 = vpop.f32.mrf.mxu0
        %912 = vmatprep.mubr.bf16.mxu0 %v703
        %913 = vmatmul.mubr.bf16.gmra.mxu0 %v533
        %v914 = vpop.f32.mrf.mxu0
        %v915 = vadd.f32 %v309, %v914
        %v916 = vpop.f32.mrf.mxu0
        %v917 = vpop.f32.mrf.mxu0
        %v918 = vadd.f32 %v309, %v917
        %v919 = vpop.f32.mrf.mxu0
        %920 = vmatprep.mubr.bf16.mxu0 %v706
        %921 = vmatmul.mubr.bf16.gmra.mxu0 %v535
        %v922 = vpop.f32.mrf.mxu0
        %v923 = vadd.f32 %v309, %v922
        %v924 = vpop.f32.mrf.mxu0
        %v925 = vpop.f32.mrf.mxu0
        %v926 = vadd.f32 %v309, %v925
        %v927 = vpop.f32.mrf.mxu0
        %928 = vmatprep.mubr.bf16.mxu0 %v709
        %929 = vmatmul.mubr.bf16.gmra.mxu0 %v537
        %v930 = vpop.f32.mrf.mxu0
        %v931 = vadd.f32 %v309, %v930
        %v932 = vpop.f32.mrf.mxu0
        %v933 = vpop.f32.mrf.mxu0
        %v934 = vadd.f32 %v309, %v933
        %v935 = vpop.f32.mrf.mxu0
        %936 = vmatprep.mubr.bf16.mxu0 %v712
        %937 = vmatmul.mubr.bf16.gmra.mxu0 %v539
        %v938 = vpop.f32.mrf.mxu0
        %v939 = vadd.f32 %v309, %v938
        %v940 = vpop.f32.mrf.mxu0
        %v941 = vpop.f32.mrf.mxu0
        %v942 = vadd.f32 %v309, %v941
        %v943 = vpop.f32.mrf.mxu0
        %944 = vmatprep.mubr.bf16.mxu0 %v715
        %945 = vmatmul.mubr.bf16.gmra.mxu0 %v541
        %v946 = vpop.f32.mrf.mxu0
        %v947 = vadd.f32 %v309, %v946
        %v948 = vpop.f32.mrf.mxu0
        %v949 = vpop.f32.mrf.mxu0
        %v950 = vadd.f32 %v309, %v949
        %v951 = vpop.f32.mrf.mxu0
        %952 = vmatprep.mubr.bf16.mxu0 %v718
        %953 = vmatmul.mubr.bf16.gmra.mxu0 %v543
        %v954 = vpop.f32.mrf.mxu0
        %v955 = vadd.f32 %v309, %v954
        %v956 = vpop.f32.mrf.mxu0
        %v957 = vpop.f32.mrf.mxu0
        %v958 = vadd.f32 %v309, %v957
        %v959 = vpop.f32.mrf.mxu0
        %960 = vmatprep.mubr.bf16.mxu0 %v721
        %961 = vmatmul.mubr.bf16.gmra.mxu0 %v545
        %v962 = vpop.f32.mrf.mxu0
        %v963 = vadd.f32 %v309, %v962
        %v964 = vpop.f32.mrf.mxu0
        %v965 = vpop.f32.mrf.mxu0
        %v966 = vadd.f32 %v309, %v965
        %v967 = vpop.f32.mrf.mxu0
        %968 = vmatprep.mubr.bf16.mxu0 %v724
        %969 = vmatmul.mubr.bf16.gmra.mxu0 %v547
        %v970 = vpop.f32.mrf.mxu0
        %v971 = vadd.f32 %v309, %v970
        %v972 = vpop.f32.mrf.mxu0
        %v973 = vpop.f32.mrf.mxu0
        %v974 = vadd.f32 %v309, %v973
        %v975 = vpop.f32.mrf.mxu0
        %976 = vmatprep.mubr.bf16.mxu0 %v727
        %977 = vmatmul.mubr.bf16.gmra.mxu0 %v549
        %v978 = vpop.f32.mrf.mxu0
        %v979 = vadd.f32 %v309, %v978
        %v980 = vpop.f32.mrf.mxu0
        %v981 = vpop.f32.mrf.mxu0
        %v982 = vadd.f32 %v309, %v981
        %v983 = vpop.f32.mrf.mxu0
        %984 = vmatprep.mubr.bf16.mxu0 %v730
        %985 = vmatmul.mubr.bf16.gmra.mxu0 %v551
        %v986 = vpop.f32.mrf.mxu0
        %v987 = vadd.f32 %v309, %v986
        %v988 = vpop.f32.mrf.mxu0
        %v989 = vpop.f32.mrf.mxu0
        %v990 = vadd.f32 %v309, %v989
        %v991 = vpop.f32.mrf.mxu0
        %992 = vmatprep.mubr.bf16.mxu0 %v733
        %993 = vmatmul.mubr.bf16.gmra.mxu0 %v553
        %v994 = vpop.f32.mrf.mxu0
        %v995 = vadd.f32 %v309, %v994
        %v996 = vpop.f32.mrf.mxu0
        %v997 = vpop.f32.mrf.mxu0
        %v998 = vadd.f32 %v309, %v997
        %v999 = vpop.f32.mrf.mxu0
        %1000 = vmatprep.mubr.bf16.mxu0 %v736
        %1001 = vmatmul.mubr.bf16.gmra.mxu0 %v555
        %v1002 = vpop.f32.mrf.mxu0
        %v1003 = vadd.f32 %v309, %v1002
        %v1004 = vpop.f32.mrf.mxu0
        %v1005 = vpop.f32.mrf.mxu0
        %v1006 = vadd.f32 %v309, %v1005
        %v1007 = vpop.f32.mrf.mxu0
        %1008 = vmatprep.mubr.bf16.mxu0 %v739
        %1009 = vmatmul.mubr.bf16.gmra.mxu0 %v557
        %v1010 = vpop.f32.mrf.mxu0
        %v1011 = vadd.f32 %v309, %v1010
        %v1012 = vpop.f32.mrf.mxu0
        %v1013 = vpop.f32.mrf.mxu0
        %v1014 = vadd.f32 %v309, %v1013
        %v1015 = vpop.f32.mrf.mxu0
        %1016 = vmatprep.mubr.bf16.mxu0 %v742
        %1017 = vmatmul.mubr.bf16.gmra.mxu0 %v559
        %v1018 = vpop.f32.mrf.mxu0
        %v1019 = vadd.f32 %v309, %v1018
        %v1020 = vpop.f32.mrf.mxu0
        %v1021 = vpop.f32.mrf.mxu0
        %v1022 = vadd.f32 %v309, %v1021
        %v1023 = vpop.f32.mrf.mxu0
        %1024 = vmatprep.mubr.bf16.mxu0 %v745
        %1025 = vmatmul.mubr.bf16.gmra.mxu0 %v561
        %v1026 = vpop.f32.mrf.mxu0
        %v1027 = vadd.f32 %v309, %v1026
        %v1028 = vpop.f32.mrf.mxu0
        %v1029 = vpop.f32.mrf.mxu0
        %v1030 = vadd.f32 %v309, %v1029
        %v1031 = vpop.f32.mrf.mxu0
        %1032 = vmatprep.mubr.bf16.mxu0 %v748
        %1033 = vmatmul.mubr.bf16.gmra.mxu0 %v563
        %v1034 = vpop.f32.mrf.mxu0
        %v1035 = vadd.f32 %v309, %v1034
        %v1036 = vpop.f32.mrf.mxu0
        %v1037 = vpop.f32.mrf.mxu0
        %v1038 = vadd.f32 %v309, %v1037
        %v1039 = vpop.f32.mrf.mxu0
        %1040 = vmatprep.mubr.bf16.mxu0 %v751
        %1041 = vmatmul.mubr.bf16.gmra.mxu0 %v565
        %v1042 = vpop.f32.mrf.mxu0
        %v1043 = vadd.f32 %v309, %v1042
        %v1044 = vpop.f32.mrf.mxu0
        %v1045 = vpop.f32.mrf.mxu0
        %v1046 = vadd.f32 %v309, %v1045
        %v1047 = vpop.f32.mrf.mxu0
        %1048 = vdwg.mxu0
        %v1049 = vmax.f32 %v795, 0.0
        %v1050 = vmax.f32 %v798, 0.0
        %v1051 = vmax.f32 %v803, 0.0
        %v1052 = vmax.f32 %v806, 0.0
        %v1053 = vmax.f32 %v811, 0.0
        %v1054 = vmax.f32 %v814, 0.0
        %v1055 = vmax.f32 %v819, 0.0
        %v1056 = vmax.f32 %v822, 0.0
        %v1057 = vmax.f32 %v827, 0.0
        %v1058 = vmax.f32 %v830, 0.0
        %v1059 = vmax.f32 %v835, 0.0
        %v1060 = vmax.f32 %v838, 0.0
        %v1061 = vmax.f32 %v843, 0.0
        %v1062 = vmax.f32 %v846, 0.0
        %v1063 = vmax.f32 %v851, 0.0
        %v1064 = vmax.f32 %v854, 0.0
        %v1065 = vmax.f32 %v859, 0.0
        %v1066 = vmax.f32 %v862, 0.0
        %v1067 = vmax.f32 %v867, 0.0
        %v1068 = vmax.f32 %v870, 0.0
        %v1069 = vmax.f32 %v875, 0.0
        %v1070 = vmax.f32 %v878, 0.0
        %v1071 = vmax.f32 %v883, 0.0
        %v1072 = vmax.f32 %v886, 0.0
        %v1073 = vmax.f32 %v891, 0.0
        %v1074 = vmax.f32 %v894, 0.0
        %v1075 = vmax.f32 %v899, 0.0
        %v1076 = vmax.f32 %v902, 0.0
        %v1077 = vmax.f32 %v907, 0.0
        %v1078 = vmax.f32 %v910, 0.0
        %v1079 = vmax.f32 %v915, 0.0
        %v1080 = vmax.f32 %v918, 0.0
        %v1081 = vmax.f32 %v923, 0.0
        %v1082 = vmax.f32 %v926, 0.0
        %v1083 = vmax.f32 %v931, 0.0
        %v1084 = vmax.f32 %v934, 0.0
        %v1085 = vmax.f32 %v939, 0.0
        %v1086 = vmax.f32 %v942, 0.0
        %v1087 = vmax.f32 %v947, 0.0
        %v1088 = vmax.f32 %v950, 0.0
        %v1089 = vmax.f32 %v955, 0.0
        %v1090 = vmax.f32 %v958, 0.0
        %v1091 = vmax.f32 %v963, 0.0
        %v1092 = vmax.f32 %v966, 0.0
        %v1093 = vmax.f32 %v971, 0.0
        %v1094 = vmax.f32 %v974, 0.0
        %v1095 = vmax.f32 %v979, 0.0
        %v1096 = vmax.f32 %v982, 0.0
        %v1097 = vmax.f32 %v987, 0.0
        %v1098 = vmax.f32 %v990, 0.0
        %v1099 = vmax.f32 %v995, 0.0
        %v1100 = vmax.f32 %v998, 0.0
        %v1101 = vmax.f32 %v1003, 0.0
        %v1102 = vmax.f32 %v1006, 0.0
        %v1103 = vmax.f32 %v1011, 0.0
        %v1104 = vmax.f32 %v1014, 0.0
        %v1105 = vmax.f32 %v1019, 0.0
        %v1106 = vmax.f32 %v1022, 0.0
        %v1107 = vmax.f32 %v1027, 0.0
        %v1108 = vmax.f32 %v1030, 0.0
        %v1109 = vmax.f32 %v1035, 0.0
        %v1110 = vmax.f32 %v1038, 0.0
        %v1111 = vmax.f32 %v1043, 0.0
        %v1112 = vmax.f32 %v1046, 0.0
        %v1113 = vpack.c.bf16 %v1050, %v1049
        %v1114 = vpack.c.bf16 %v1052, %v1051
        %v1115 = vpack.c.bf16 %v1054, %v1053
        %v1116 = vpack.c.bf16 %v1056, %v1055
        %v1117 = vpack.c.bf16 %v1058, %v1057
        %v1118 = vpack.c.bf16 %v1060, %v1059
        %v1119 = vpack.c.bf16 %v1062, %v1061
        %v1120 = vpack.c.bf16 %v1064, %v1063
        %v1121 = vpack.c.bf16 %v1066, %v1065
        %v1122 = vpack.c.bf16 %v1068, %v1067
        %v1123 = vpack.c.bf16 %v1070, %v1069
        %v1124 = vpack.c.bf16 %v1072, %v1071
        %v1125 = vpack.c.bf16 %v1074, %v1073
        %v1126 = vpack.c.bf16 %v1076, %v1075
        %v1127 = vpack.c.bf16 %v1078, %v1077
        %v1128 = vpack.c.bf16 %v1080, %v1079
        %v1129 = vpack.c.bf16 %v1082, %v1081
        %v1130 = vpack.c.bf16 %v1084, %v1083
        %v1131 = vpack.c.bf16 %v1086, %v1085
        %v1132 = vpack.c.bf16 %v1088, %v1087
        %v1133 = vpack.c.bf16 %v1090, %v1089
        %v1134 = vpack.c.bf16 %v1092, %v1091
        %v1135 = vpack.c.bf16 %v1094, %v1093
        %v1136 = vpack.c.bf16 %v1096, %v1095
        %v1137 = vpack.c.bf16 %v1098, %v1097
        %v1138 = vpack.c.bf16 %v1100, %v1099
        %v1139 = vpack.c.bf16 %v1102, %v1101
        %v1140 = vpack.c.bf16 %v1104, %v1103
        %v1141 = vpack.c.bf16 %v1106, %v1105
        %v1142 = vpack.c.bf16 %v1108, %v1107
        %v1143 = vpack.c.bf16 %v1110, %v1109
        %v1144 = vpack.c.bf16 %v1112, %v1111
        %v1177 = vunpack.c.l.b16 %v1113
        %v1178 = vunpack.c.h.b16 %v1113
        %v1179 = vunpack.c.l.b16 %v1114
        %v1180 = vunpack.c.h.b16 %v1114
        %v1181 = vunpack.c.l.b16 %v1115
        %v1182 = vunpack.c.h.b16 %v1115
        %v1183 = vunpack.c.l.b16 %v1116
        %v1184 = vunpack.c.h.b16 %v1116
        %v1185 = vunpack.c.l.b16 %v1117
        %v1186 = vunpack.c.h.b16 %v1117
        %v1187 = vunpack.c.l.b16 %v1118
        %v1188 = vunpack.c.h.b16 %v1118
        %v1189 = vunpack.c.l.b16 %v1119
        %v1190 = vunpack.c.h.b16 %v1119
        %v1191 = vunpack.c.l.b16 %v1120
        %v1192 = vunpack.c.h.b16 %v1120
        %v1193 = vunpack.c.l.b16 %v1121
        %v1194 = vunpack.c.h.b16 %v1121
        %v1195 = vunpack.c.l.b16 %v1122
        %v1196 = vunpack.c.h.b16 %v1122
        %v1197 = vunpack.c.l.b16 %v1123
        %v1198 = vunpack.c.h.b16 %v1123
        %v1199 = vunpack.c.l.b16 %v1124
        %v1200 = vunpack.c.h.b16 %v1124
        %v1201 = vunpack.c.l.b16 %v1125
        %v1202 = vunpack.c.h.b16 %v1125
        %v1203 = vunpack.c.l.b16 %v1126
        %v1204 = vunpack.c.h.b16 %v1126
        %v1205 = vunpack.c.l.b16 %v1127
        %v1206 = vunpack.c.h.b16 %v1127
        %v1207 = vunpack.c.l.b16 %v1128
        %v1208 = vunpack.c.h.b16 %v1128
        %v1209 = vunpack.c.l.b16 %v1129
        %v1210 = vunpack.c.h.b16 %v1129
        %v1211 = vunpack.c.l.b16 %v1130
        %v1212 = vunpack.c.h.b16 %v1130
        %v1213 = vunpack.c.l.b16 %v1131
        %v1214 = vunpack.c.h.b16 %v1131
        %v1215 = vunpack.c.l.b16 %v1132
        %v1216 = vunpack.c.h.b16 %v1132
        %v1217 = vunpack.c.l.b16 %v1133
        %v1218 = vunpack.c.h.b16 %v1133
        %v1219 = vunpack.c.l.b16 %v1134
        %v1220 = vunpack.c.h.b16 %v1134
        %v1221 = vunpack.c.l.b16 %v1135
        %v1222 = vunpack.c.h.b16 %v1135
        %v1223 = vunpack.c.l.b16 %v1136
        %v1224 = vunpack.c.h.b16 %v1136
        %v1225 = vunpack.c.l.b16 %v1137
        %v1226 = vunpack.c.h.b16 %v1137
        %v1227 = vunpack.c.l.b16 %v1138
        %v1228 = vunpack.c.h.b16 %v1138
        %v1229 = vunpack.c.l.b16 %v1139
        %v1230 = vunpack.c.h.b16 %v1139
        %v1231 = vunpack.c.l.b16 %v1140
        %v1232 = vunpack.c.h.b16 %v1140
        %v1233 = vunpack.c.l.b16 %v1141
        %v1234 = vunpack.c.h.b16 %v1141
        %v1235 = vunpack.c.l.b16 %v1142
        %v1236 = vunpack.c.h.b16 %v1142
        %v1237 = vunpack.c.l.b16 %v1143
        %v1238 = vunpack.c.h.b16 %v1143
        %v1239 = vunpack.c.l.b16 %v1144
        %v1240 = vunpack.c.h.b16 %v1144
        %v1241 = vpack.c.b16 %v1177, %v1177
        %v1242 = vpack.c.b16 %v1178, %v1178
        %v1243 = vpack.c.b16 %v1179, %v1179
        %v1244 = vpack.c.b16 %v1180, %v1180
        %v1245 = vpack.c.b16 %v1181, %v1181
        %v1246 = vpack.c.b16 %v1182, %v1182
        %v1247 = vpack.c.b16 %v1183, %v1183
        %v1248 = vpack.c.b16 %v1184, %v1184
        %v1249 = vpack.c.b16 %v1185, %v1185
        %v1250 = vpack.c.b16 %v1186, %v1186
        %v1251 = vpack.c.b16 %v1187, %v1187
        %v1252 = vpack.c.b16 %v1188, %v1188
        %v1253 = vpack.c.b16 %v1189, %v1189
        %v1254 = vpack.c.b16 %v1190, %v1190
        %v1255 = vpack.c.b16 %v1191, %v1191
        %v1256 = vpack.c.b16 %v1192, %v1192
        %v1257 = vpack.c.b16 %v1193, %v1193
        %v1258 = vpack.c.b16 %v1194, %v1194
        %v1259 = vpack.c.b16 %v1195, %v1195
        %v1260 = vpack.c.b16 %v1196, %v1196
        %v1261 = vpack.c.b16 %v1197, %v1197
        %v1262 = vpack.c.b16 %v1198, %v1198
        %v1263 = vpack.c.b16 %v1199, %v1199
        %v1264 = vpack.c.b16 %v1200, %v1200
        %v1265 = vpack.c.b16 %v1201, %v1201
        %v1266 = vpack.c.b16 %v1202, %v1202
        %v1267 = vpack.c.b16 %v1203, %v1203
        %v1268 = vpack.c.b16 %v1204, %v1204
        %v1269 = vpack.c.b16 %v1205, %v1205
        %v1270 = vpack.c.b16 %v1206, %v1206
        %v1271 = vpack.c.b16 %v1207, %v1207
        %v1272 = vpack.c.b16 %v1208, %v1208
        %v1273 = vpack.c.b16 %v1209, %v1209
        %v1274 = vpack.c.b16 %v1210, %v1210
        %v1275 = vpack.c.b16 %v1211, %v1211
        %v1276 = vpack.c.b16 %v1212, %v1212
        %v1277 = vpack.c.b16 %v1213, %v1213
        %v1278 = vpack.c.b16 %v1214, %v1214
        %v1279 = vpack.c.b16 %v1215, %v1215
        %v1280 = vpack.c.b16 %v1216, %v1216
        %v1281 = vpack.c.b16 %v1217, %v1217
        %v1282 = vpack.c.b16 %v1218, %v1218
        %v1283 = vpack.c.b16 %v1219, %v1219
        %v1284 = vpack.c.b16 %v1220, %v1220
        %v1285 = vpack.c.b16 %v1221, %v1221
        %v1286 = vpack.c.b16 %v1222, %v1222
        %v1287 = vpack.c.b16 %v1223, %v1223
        %v1288 = vpack.c.b16 %v1224, %v1224
        %v1289 = vpack.c.b16 %v1225, %v1225
        %v1290 = vpack.c.b16 %v1226, %v1226
        %v1291 = vpack.c.b16 %v1227, %v1227
        %v1292 = vpack.c.b16 %v1228, %v1228
        %v1293 = vpack.c.b16 %v1229, %v1229
        %v1294 = vpack.c.b16 %v1230, %v1230
        %v1295 = vpack.c.b16 %v1231, %v1231
        %v1296 = vpack.c.b16 %v1232, %v1232
        %v1297 = vpack.c.b16 %v1233, %v1233
        %v1298 = vpack.c.b16 %v1234, %v1234
        %v1299 = vpack.c.b16 %v1235, %v1235
        %v1300 = vpack.c.b16 %v1236, %v1236
        %v1301 = vpack.c.b16 %v1237, %v1237
        %v1302 = vpack.c.b16 %v1238, %v1238
        %v1303 = vpack.c.b16 %v1239, %v1239
        %v1304 = vpack.c.b16 %v1240, %v1240
        %1369 = vst [vmem:[%s204] sm:$0xf] %v1241
        %1370 = vst [vmem:[%s204 + $0x4] sm:$0xf] %v1242
        %1371 = vst [vmem:[%s204 + $0x8] sm:$0xf] %v1243
        %1372 = vst [vmem:[%s204 + $0xc] sm:$0xf] %v1244
        %1373 = vst [vmem:[%s204 + $0x10] sm:$0xf] %v1245
        %1374 = vst [vmem:[%s204 + $0x14] sm:$0xf] %v1246
        %1375 = vst [vmem:[%s204 + $0x18] sm:$0xf] %v1247
        %1376 = vst [vmem:[%s204 + $0x1c] sm:$0xf] %v1248
        %1377 = vst [vmem:[%s204 + $0x20] sm:$0xf] %v1249
        %1378 = vst [vmem:[%s204 + $0x24] sm:$0xf] %v1250
        %1379 = vst [vmem:[%s204 + $0x28] sm:$0xf] %v1251
        %1380 = vst [vmem:[%s204 + $0x2c] sm:$0xf] %v1252
        %1381 = vst [vmem:[%s204 + $0x30] sm:$0xf] %v1253
        %1382 = vst [vmem:[%s204 + $0x34] sm:$0xf] %v1254
        %1383 = vst [vmem:[%s204 + $0x38] sm:$0xf] %v1255
        %1384 = vst [vmem:[%s204 + $0x3c] sm:$0xf] %v1256
        %1385 = vst [vmem:[%s204 + $0x40] sm:$0xf] %v1257
        %1386 = vst [vmem:[%s204 + $0x44] sm:$0xf] %v1258
        %1387 = vst [vmem:[%s204 + $0x48] sm:$0xf] %v1259
        %1388 = vst [vmem:[%s204 + $0x4c] sm:$0xf] %v1260
        %1389 = vst [vmem:[%s204 + $0x50] sm:$0xf] %v1261
        %1390 = vst [vmem:[%s204 + $0x54] sm:$0xf] %v1262
        %1391 = vst [vmem:[%s204 + $0x58] sm:$0xf] %v1263
        %1392 = vst [vmem:[%s204 + $0x5c] sm:$0xf] %v1264
        %1393 = vst [vmem:[%s204 + $0x60] sm:$0xf] %v1265
        %1394 = vst [vmem:[%s204 + $0x64] sm:$0xf] %v1266
        %1395 = vst [vmem:[%s204 + $0x68] sm:$0xf] %v1267
        %1396 = vst [vmem:[%s204 + $0x6c] sm:$0xf] %v1268
        %1397 = vst [vmem:[%s204 + $0x70] sm:$0xf] %v1269
        %1398 = vst [vmem:[%s204 + $0x74] sm:$0xf] %v1270
        %1399 = vst [vmem:[%s204 + $0x78] sm:$0xf] %v1271
        %1400 = vst [vmem:[%s204 + $0x7c] sm:$0xf] %v1272
        %1401 = vst [vmem:[%s204 + $0x80] sm:$0xf] %v1273
        %1402 = vst [vmem:[%s204 + $0x84] sm:$0xf] %v1274
        %1403 = vst [vmem:[%s204 + $0x88] sm:$0xf] %v1275
        %1404 = vst [vmem:[%s204 + $0x8c] sm:$0xf] %v1276
        %1405 = vst [vmem:[%s204 + $0x90] sm:$0xf] %v1277
        %1406 = vst [vmem:[%s204 + $0x94] sm:$0xf] %v1278
        %1407 = vst [vmem:[%s204 + $0x98] sm:$0xf] %v1279
        %1408 = vst [vmem:[%s204 + $0x9c] sm:$0xf] %v1280
        %1409 = vst [vmem:[%s204 + $0xa0] sm:$0xf] %v1281
        %1410 = vst [vmem:[%s204 + $0xa4] sm:$0xf] %v1282
        %1411 = vst [vmem:[%s204 + $0xa8] sm:$0xf] %v1283
        %1412 = vst [vmem:[%s204 + $0xac] sm:$0xf] %v1284
        %1413 = vst [vmem:[%s204 + $0xb0] sm:$0xf] %v1285
        %1414 = vst [vmem:[%s204 + $0xb4] sm:$0xf] %v1286
        %1415 = vst [vmem:[%s204 + $0xb8] sm:$0xf] %v1287
        %1416 = vst [vmem:[%s204 + $0xbc] sm:$0xf] %v1288
        %1417 = vst [vmem:[%s204 + $0xc0] sm:$0xf] %v1289
        %1418 = vst [vmem:[%s204 + $0xc4] sm:$0xf] %v1290
        %1419 = vst [vmem:[%s204 + $0xc8] sm:$0xf] %v1291
        %1420 = vst [vmem:[%s204 + $0xcc] sm:$0xf] %v1292
        %1421 = vst [vmem:[%s204 + $0xd0] sm:$0xf] %v1293
        %1422 = vst [vmem:[%s204 + $0xd4] sm:$0xf] %v1294
        %1423 = vst [vmem:[%s204 + $0xd8] sm:$0xf] %v1295
        %1424 = vst [vmem:[%s204 + $0xdc] sm:$0xf] %v1296
        %1425 = vst [vmem:[%s204 + $0xe0] sm:$0xf] %v1297
        %1426 = vst [vmem:[%s204 + $0xe4] sm:$0xf] %v1298
        %1427 = vst [vmem:[%s204 + $0xe8] sm:$0xf] %v1299
        %1428 = vst [vmem:[%s204 + $0xec] sm:$0xf] %v1300
        %1429 = vst [vmem:[%s204 + $0xf0] sm:$0xf] %v1301
        %1430 = vst [vmem:[%s204 + $0xf4] sm:$0xf] %v1302
        %1431 = vst [vmem:[%s204 + $0xf8] sm:$0xf] %v1303
        %1432 = vst [vmem:[%s204 + $0xfc] sm:$0xf] %v1304
        %s1433 = sand.u32 %s117, 1
        %s1434 = scalar_lea.sflag [#allocation3], %s1433
        %s1435 = sand.u32 %s117, 1
        %s1436 = smul.addr %s1435, 256
        %s1437 = scalar_lea.vmem [#allocation2], %s1436
        // Predicated region
        $region33: #{matmul_bias_act.1} parent=31 // pred_check
          %p1438 = pneg %p127
        $region34: #{matmul_bias_act.1} parent=31 // pred_check_branch
          %1440 = sbr.rel (%p1438) target = $region36
        $region35: #{matmul_bias_act.1} parent=31 // pred_region
          %s1441 = smul.u32 64, %s21
          %s1443 = ssub.s32 4096, 4096
          %1444 = vsyncadd %s1434, %s1443
          %s1445 = sadd.s32 %s22, %s1441
          %s1446 = smul.addr %s1445, 64
          %s1447 = scalar_lea.hbm %s3, %s1446
          %s1448 = sshll.u32 %s1437, 4
          %s1449 = int_to_ptr.vmem [resolvable:$true] %s1448
          %1454 = dma.vmem_to_hbm [thread:$0]  %s1449, 4096, %s1447, %s1434, 64, 64, 4
        $region36: #{matmul_bias_act.1} parent=31 // pred_fallthru
          _
      $region32: #{matmul_bias_act.1} parent=5 // pred_fallthru
        _
      %p1455 = scmp.le.s32.totalorder 2, %s12
      // Predicated region
      $region37: #{matmul_bias_act.1} parent=5 // pred_check
        %p1456 = pneg %p1455
      $region38: #{matmul_bias_act.1} parent=5 // pred_check_branch
        %1458 = sbr.rel (%p1456) target = $region40
      $region39: #{matmul_bias_act.1} parent=5 // pred_region
        %s1459 = ssub.s32 %s12, 2
        // Predicated region
        $region41: #{matmul_bias_act.1} parent=39 // pred_check
          %p1460 = pneg %p133
        $region42: #{matmul_bias_act.1} parent=39 // pred_check_branch
          %1462 = sbr.rel (%p1460) target = $region44
        $region43: #{matmul_bias_act.1} parent=39 // pred_region
          %s1463 = sand.u32 %s118, 1
          %s1464 = scalar_lea.sflag [#allocation3], %s1463
          %s1465 = sand.u32 %s118, 1
          %s1466 = smul.addr %s1465, 256
          %s1467 = scalar_lea.vmem [#allocation2], %s1466
          %1468 = dma.done %s1464, 4096
        $region44: #{matmul_bias_act.1} parent=39 // pred_fallthru
          _
      $region40: #{matmul_bias_act.1} parent=5 // pred_fallthru
        _
    $region6: #{matmul_bias_act.1} parent=1 // loop_footer
      %s16 = sadd.s32 1, %s12
    $region7: #{matmul_bias_act.1} parent=1 // loop_footer_branch
      %11 = sbr.rel target = $region3
    $region8: #{matmul_bias_act.1} parent=1 // loop_exit
      _
    %1469 = vsyncpa [#allocation3], 1
    %s1470 = scalar_lea.sflag [#allocation3], 1
    %1471 = vsyncpa %s1470, 1

</llo_original>
